<compile_context>
chip_gen: v7x
topology: tpu7x:2x2x1
jax: 0.10.0
libtpu: 0.0.40
codegen_flags: <defaults>
</compile_context>

<pallas_src>
import math

import jax
import jax.numpy as jnp
from jax.experimental import pallas as pl
from jax.experimental.pallas import tpu as pltpu


def lstm_kernel(gx_ref, hc0_ref, w_ref, bdec_ref,
                out_ref, hc_out_ref,
                h_all_sc):
    """Whole-sequence LSTM recurrence + batched decoder, single invocation.

    gx_ref:    (T*B_pad, 4H)  precomputed input-gate contributions
               (embedding @ W_ih^T + biases), time-major rows t*B_pad + b,
               gate order [i, f, o, g].
    hc0_ref:   (2*B_pad, H)   rows [0:B_pad)=h0, [B_pad:2*B_pad)=c0.
    w_ref:     (H, 4H+O_pad)  [:, :4H] = W_hh^T (reordered), [:, 4H:] = W_dec^T
               zero-padded to O_pad lanes.
    bdec_ref:  (1, O_pad)     decoder bias, zero-padded.
    out_ref:   (T*B_pad, O_pad) logits (lane-dense).
    hc_out_ref:(2*B_pad, H)   final h (top half) / c (bottom half).
    h_all_sc:  (T*B_pad, H)   VMEM scratch collecting per-step hidden states.
    """
    Bp = hc0_ref.shape[0] // 2          # padded batch = 8 (f32 sublane count)
    H = hc0_ref.shape[1]
    T = gx_ref.shape[0] // Bp
    G = 4 * H

    whh = w_ref[:, :G]                  # (H, 4H)
    wdec = w_ref[:, G:]                 # (H, O_pad)

    h = hc0_ref[:Bp, :]                 # (Bp, H)
    c = hc0_ref[Bp:, :]                 # (Bp, H)

    # Recurrence: fully unrolled static loop (T small & static), so every
    # slice / scratch index is compile-time constant and (8,128)-aligned.
    for t in range(T):
        gates = gx_ref[t * Bp:(t + 1) * Bp, :] + jnp.dot(
            h, whh, preferred_element_type=jnp.float32)       # (Bp, 4H)

        # Gate order [i, f, o, g]: one sigmoid over 3H lanes, one tanh over H.
        sig = jax.nn.sigmoid(gates[:, :3 * H])
        g_g = jnp.tanh(gates[:, 3 * H:])
        i_g = sig[:, 0 * H:1 * H]
        f_g = sig[:, 1 * H:2 * H]
        o_g = sig[:, 2 * H:3 * H]

        c = f_g * c + i_g * g_g
        h = o_g * jnp.tanh(c)

        h_all_sc[t * Bp:(t + 1) * Bp, :] = h

    # Final states written exactly once (packed h over c).
    hc_out_ref[:Bp, :] = h
    hc_out_ref[Bp:, :] = c

    # Batched decoder over all timesteps: one (T*Bp, H) @ (H, O_pad) matmul,
    # single unmasked lane-dense store.
    out_ref[...] = (jnp.dot(h_all_sc[...], wdec,
                            preferred_element_type=jnp.float32)
                    + bdec_ref[...])


def lstm_forward(indices, h0, c0, params):
    """Full forward: gate-table gather (glue) + single Pallas LSTM+decoder kernel.

    indices: int32 (B, T); h0, c0: float32 (1, B, H).
    Returns (output (B, T, O), (hidden (1,B,H), cell (1,B,H))).
    """
    emb = params["emb"]                       # (V, H)
    B, T = indices.shape
    H = emb.shape[1]
    O = params["w_dec"].shape[0]
    B_pad = 8                                 # f32 sublane count
    O_pad = 128                               # lane-dense output width

    # Permute PyTorch gate order [i, f, g, o] -> [i, f, o, g].
    perm = jnp.concatenate([jnp.arange(0, H), jnp.arange(H, 2 * H),
                            jnp.arange(3 * H, 4 * H), jnp.arange(2 * H, 3 * H)])
    w_ih_r = params["w_ih"][perm]             # (4H, H)
    w_hh_r = params["w_hh"][perm]             # (4H, H)
    b_r = (params["b_ih"] + params["b_hh"])[perm]  # (4H,)

    # Precomputed gate table: embedding folded with input projection + biases.
    gate_table = emb @ w_ih_r.T + b_r[None, :]          # (V, 4H)

    # Per-token input-gate contributions, time-major, batch padded to B_pad.
    idx_pad = jnp.pad(indices, ((0, B_pad - B), (0, 0)))      # (B_pad, T)
    gx = jnp.take(gate_table, idx_pad.T.reshape(-1), axis=0)  # (T*B_pad, 4H)

    # Packed recurrent + (lane-padded) decoder weights: (H, 4H + O_pad).
    w_dec_pad = jnp.zeros((H, O_pad), jnp.float32).at[:, :O].set(params["w_dec"].T)
    w_comb = jnp.concatenate([w_hh_r.T, w_dec_pad], axis=1)

    b_dec_pad = jnp.zeros((1, O_pad), jnp.float32).at[:, :O].set(params["b_dec"])

    # Packed, padded initial states: rows [0:B_pad)=h0, [B_pad:2*B_pad)=c0.
    hc0 = (jnp.zeros((2 * B_pad, H), jnp.float32)
           .at[:B, :].set(h0[0])
           .at[B_pad:B_pad + B, :].set(c0[0]))

    vmem = pl.BlockSpec(memory_space=pltpu.MemorySpace.VMEM)

    out_flat, hc_out = pl.pallas_call(
        lstm_kernel,
        out_shape=(
            jax.ShapeDtypeStruct((T * B_pad, O_pad), jnp.float32),
            jax.ShapeDtypeStruct((2 * B_pad, H), jnp.float32),
        ),
        in_specs=[vmem] * 4,
        out_specs=(vmem, vmem),
        scratch_shapes=[pltpu.VMEM((T * B_pad, H), jnp.float32)],
    )(gx, hc0, w_comb, b_dec_pad)

    # Strip padding, restore batch-first layout.
    out = jnp.transpose(out_flat.reshape(T, B_pad, O_pad)[:, :B, :O], (1, 0, 2))
    h_out = hc_out[:B, :][None]                          # (1, B, H)
    c_out = hc_out[B_pad:B_pad + B, :][None]             # (1, B, H)
    return out, (h_out, c_out)


def lstm_ref(indices, h0, c0, params):
    """Pure-JAX reference matching PyTorch semantics (for verification)."""
    x = jnp.take(params["emb"], indices, axis=0)     # (B, T, H)
    x_t = jnp.transpose(x, (1, 0, 2))                # (T, B, H)
    w_ih, w_hh = params["w_ih"], params["w_hh"]
    b_ih, b_hh = params["b_ih"], params["b_hh"]
    w_dec, b_dec = params["w_dec"], params["b_dec"]
    H = w_hh.shape[1]

    def step(carry, xt):
        h, c = carry
        gates = xt @ w_ih.T + h @ w_hh.T + b_ih + b_hh
        i = jax.nn.sigmoid(gates[:, 0 * H:1 * H])
        f = jax.nn.sigmoid(gates[:, 1 * H:2 * H])
        g = jnp.tanh(gates[:, 2 * H:3 * H])
        o = jax.nn.sigmoid(gates[:, 3 * H:4 * H])
        c = f * c + i * g
        h = o * jnp.tanh(c)
        y = h @ w_dec.T + b_dec
        return (h, c), y

    (hN, cN), ys = jax.lax.scan(step, (h0[0], c0[0]), x_t)
    return jnp.transpose(ys, (1, 0, 2)), hN[None], cN[None]


if __name__ == "__main__":
    # Small shapes consistent with the module:
    #   vocab (input_size)=16, hidden=32, output_size=16, batch=2, seq=8,
    #   n_layers=1, unidirectional, dropout=0, no softmax.
    V, H, O, B, T = 16, 32, 16, 2, 8

    key = jax.random.PRNGKey(0)
    ks = jax.random.split(key, 10)
    kscale = 1.0 / math.sqrt(H)
    params = dict(
        emb=jax.random.normal(ks[0], (V, H), jnp.float32),                    # Embedding ~ N(0,1)
        w_ih=jax.random.uniform(ks[1], (4 * H, H), jnp.float32, -kscale, kscale),
        w_hh=jax.random.uniform(ks[2], (4 * H, H), jnp.float32, -kscale, kscale),
        b_ih=jax.random.uniform(ks[3], (4 * H,), jnp.float32, -kscale, kscale),
        b_hh=jax.random.uniform(ks[4], (4 * H,), jnp.float32, -kscale, kscale),
        w_dec=jax.random.uniform(ks[5], (O, H), jnp.float32, -kscale, kscale),
        b_dec=jax.random.uniform(ks[6], (O,), jnp.float32, -kscale, kscale),
    )

    idx = jax.random.randint(ks[7], (B, T), 0, V)                              # token ids
    h0 = jax.random.uniform(ks[8], (1, B, H), jnp.float32)                     # init_h_c()
    c0 = jax.random.uniform(ks[9], (1, B, H), jnp.float32)

    out, (hN, cN) = lstm_forward(idx, h0, c0, params)
    jax.block_until_ready((out, hN, cN))

    ref_out, ref_h, ref_c = lstm_ref(idx, h0, c0, params)
    assert out.shape == (B, T, O) and hN.shape == (1, B, H) and cN.shape == (1, B, H)
    assert jnp.allclose(out, ref_out, atol=1e-4, rtol=1e-4)
    assert jnp.allclose(hN, ref_h, atol=1e-4, rtol=1e-4)
    assert jnp.allclose(cN, ref_c, atol=1e-4, rtol=1e-4)

    print("KERNEL_OK")
</pallas_src>

<mosaic_0001>
module attributes {stable_mosaic.version = 11 : i64} {
  func.func @lstm_kernel(%arg0: memref<64x128xf32, #tpu.memory_space<vmem>>, %arg1: memref<16x32xf32, #tpu.memory_space<vmem>>, %arg2: memref<32x256xf32, #tpu.memory_space<vmem>>, %arg3: memref<1x128xf32, #tpu.memory_space<vmem>>, %arg4: memref<64x128xf32, #tpu.memory_space<vmem>>, %arg5: memref<16x32xf32, #tpu.memory_space<vmem>>, %arg6: memref<64x32xf32, #tpu.memory_space<vmem>>) attributes {dimension_semantics = [], scalar_prefetch = 0 : i64, scratch_operands = 1 : i64, tpu.core_type = #tpu.core_type<tc>} {
    %c0 = arith.constant 0 : index
    %c0_0 = arith.constant 0 : index
    %0 = vector.load %arg2[%c0, %c0_0] : memref<32x256xf32, #tpu.memory_space<vmem>>, vector<32x128xf32>
    %c0_1 = arith.constant 0 : index
    %c128 = arith.constant 128 : index
    %1 = vector.load %arg2[%c0_1, %c128] : memref<32x256xf32, #tpu.memory_space<vmem>>, vector<32x128xf32>
    %c0_2 = arith.constant 0 : index
    %c0_3 = arith.constant 0 : index
    %2 = vector.load %arg1[%c0_2, %c0_3] : memref<16x32xf32, #tpu.memory_space<vmem>>, vector<8x32xf32>
    %c8 = arith.constant 8 : index
    %c0_4 = arith.constant 0 : index
    %3 = vector.load %arg1[%c8, %c0_4] : memref<16x32xf32, #tpu.memory_space<vmem>>, vector<8x32xf32>
    %c0_5 = arith.constant 0 : index
    %c0_6 = arith.constant 0 : index
    %4 = vector.load %arg0[%c0_5, %c0_6] : memref<64x128xf32, #tpu.memory_space<vmem>>, vector<8x128xf32>
    %cst = arith.constant dense<0.000000e+00> : vector<8x128xf32>
    %5 = tpu.matmul %2, %0, %cst {dimension_numbers = #tpu.dot_dimension_numbers<[1], [0], [0], [1], [0, 0, 1, 1], [], []>} : vector<8x32xf32>, vector<32x128xf32>, vector<8x128xf32> -> vector<8x128xf32>
    %6 = arith.addf %4, %5 : vector<8x128xf32>
    %7 = vector.extract_strided_slice %6 {offsets = [0, 0], sizes = [8, 96], strides = [1, 1]} : vector<8x128xf32> to vector<8x96xf32>
    %8 = arith.negf %7 : vector<8x96xf32>
    %9 = math.exp %8 : vector<8x96xf32>
    %cst_7 = arith.constant 1.000000e+00 : f32
    %10 = vector.broadcast %cst_7 : f32 to vector<8x96xf32>
    %11 = arith.addf %10, %9 : vector<8x96xf32>
    %12 = arith.divf %10, %11 : vector<8x96xf32>
    %13 = vector.extract_strided_slice %6 {offsets = [0, 96], sizes = [8, 32], strides = [1, 1]} : vector<8x128xf32> to vector<8x32xf32>
    %14 = math.tanh %13 : vector<8x32xf32>
    %15 = vector.extract_strided_slice %12 {offsets = [0, 0], sizes = [8, 32], strides = [1, 1]} : vector<8x96xf32> to vector<8x32xf32>
    %16 = vector.extract_strided_slice %12 {offsets = [0, 32], sizes = [8, 32], strides = [1, 1]} : vector<8x96xf32> to vector<8x32xf32>
    %17 = vector.extract_strided_slice %12 {offsets = [0, 64], sizes = [8, 32], strides = [1, 1]} : vector<8x96xf32> to vector<8x32xf32>
    %18 = arith.mulf %16, %3 : vector<8x32xf32>
    %19 = arith.mulf %15, %14 : vector<8x32xf32>
    %20 = arith.addf %18, %19 : vector<8x32xf32>
    %21 = math.tanh %20 : vector<8x32xf32>
    %22 = arith.mulf %17, %21 : vector<8x32xf32>
    %c0_8 = arith.constant 0 : index
    %c0_9 = arith.constant 0 : index
    %23 = vector.load %arg6[%c0_8, %c0_9] : memref<64x32xf32, #tpu.memory_space<vmem>>, vector<8x32xf32>
    tpu.vector_store %arg6[%c0_8, %c0_9], %22 {strides = array<i32>} : memref<64x32xf32, #tpu.memory_space<vmem>>, vector<8x32xf32>,
    %c8_10 = arith.constant 8 : index
    %c0_11 = arith.constant 0 : index
    %24 = vector.load %arg0[%c8_10, %c0_11] : memref<64x128xf32, #tpu.memory_space<vmem>>, vector<8x128xf32>
    %cst_12 = arith.constant dense<0.000000e+00> : vector<8x128xf32>
    %25 = tpu.matmul %22, %0, %cst_12 {dimension_numbers = #tpu.dot_dimension_numbers<[1], [0], [0], [1], [0, 0, 1, 1], [], []>} : vector<8x32xf32>, vector<32x128xf32>, vector<8x128xf32> -> vector<8x128xf32>
    %26 = arith.addf %24, %25 : vector<8x128xf32>
    %27 = vector.extract_strided_slice %26 {offsets = [0, 0], sizes = [8, 96], strides = [1, 1]} : vector<8x128xf32> to vector<8x96xf32>
    %28 = arith.negf %27 : vector<8x96xf32>
    %29 = math.exp %28 : vector<8x96xf32>
    %cst_13 = arith.constant 1.000000e+00 : f32
    %30 = vector.broadcast %cst_13 : f32 to vector<8x96xf32>
    %31 = arith.addf %30, %29 : vector<8x96xf32>
    %32 = arith.divf %30, %31 : vector<8x96xf32>
    %33 = vector.extract_strided_slice %26 {offsets = [0, 96], sizes = [8, 32], strides = [1, 1]} : vector<8x128xf32> to vector<8x32xf32>
    %34 = math.tanh %33 : vector<8x32xf32>
    %35 = vector.extract_strided_slice %32 {offsets = [0, 0], sizes = [8, 32], strides = [1, 1]} : vector<8x96xf32> to vector<8x32xf32>
    %36 = vector.extract_strided_slice %32 {offsets = [0, 32], sizes = [8, 32], strides = [1, 1]} : vector<8x96xf32> to vector<8x32xf32>
    %37 = vector.extract_strided_slice %32 {offsets = [0, 64], sizes = [8, 32], strides = [1, 1]} : vector<8x96xf32> to vector<8x32xf32>
    %38 = arith.mulf %36, %20 : vector<8x32xf32>
    %39 = arith.mulf %35, %34 : vector<8x32xf32>
    %40 = arith.addf %38, %39 : vector<8x32xf32>
    %41 = math.tanh %40 : vector<8x32xf32>
    %42 = arith.mulf %37, %41 : vector<8x32xf32>
    %c8_14 = arith.constant 8 : index
    %c0_15 = arith.constant 0 : index
    %43 = vector.load %arg6[%c8_14, %c0_15] : memref<64x32xf32, #tpu.memory_space<vmem>>, vector<8x32xf32>
    tpu.vector_store %arg6[%c8_14, %c0_15], %42 {strides = array<i32>} : memref<64x32xf32, #tpu.memory_space<vmem>>, vector<8x32xf32>,
    %c16 = arith.constant 16 : index
    %c0_16 = arith.constant 0 : index
    %44 = vector.load %arg0[%c16, %c0_16] : memref<64x128xf32, #tpu.memory_space<vmem>>, vector<8x128xf32>
    %cst_17 = arith.constant dense<0.000000e+00> : vector<8x128xf32>
    %45 = tpu.matmul %42, %0, %cst_17 {dimension_numbers = #tpu.dot_dimension_numbers<[1], [0], [0], [1], [0, 0, 1, 1], [], []>} : vector<8x32xf32>, vector<32x128xf32>, vector<8x128xf32> -> vector<8x128xf32>
    %46 = arith.addf %44, %45 : vector<8x128xf32>
    %47 = vector.extract_strided_slice %46 {offsets = [0, 0], sizes = [8, 96], strides = [1, 1]} : vector<8x128xf32> to vector<8x96xf32>
    %48 = arith.negf %47 : vector<8x96xf32>
    %49 = math.exp %48 : vector<8x96xf32>
    %cst_18 = arith.constant 1.000000e+00 : f32
    %50 = vector.broadcast %cst_18 : f32 to vector<8x96xf32>
    %51 = arith.addf %50, %49 : vector<8x96xf32>
    %52 = arith.divf %50, %51 : vector<8x96xf32>
    %53 = vector.extract_strided_slice %46 {offsets = [0, 96], sizes = [8, 32], strides = [1, 1]} : vector<8x128xf32> to vector<8x32xf32>
    %54 = math.tanh %53 : vector<8x32xf32>
    %55 = vector.extract_strided_slice %52 {offsets = [0, 0], sizes = [8, 32], strides = [1, 1]} : vector<8x96xf32> to vector<8x32xf32>
    %56 = vector.extract_strided_slice %52 {offsets = [0, 32], sizes = [8, 32], strides = [1, 1]} : vector<8x96xf32> to vector<8x32xf32>
    %57 = vector.extract_strided_slice %52 {offsets = [0, 64], sizes = [8, 32], strides = [1, 1]} : vector<8x96xf32> to vector<8x32xf32>
    %58 = arith.mulf %56, %40 : vector<8x32xf32>
    %59 = arith.mulf %55, %54 : vector<8x32xf32>
    %60 = arith.addf %58, %59 : vector<8x32xf32>
    %61 = math.tanh %60 : vector<8x32xf32>
    %62 = arith.mulf %57, %61 : vector<8x32xf32>
    %c16_19 = arith.constant 16 : index
    %c0_20 = arith.constant 0 : index
    %63 = vector.load %arg6[%c16_19, %c0_20] : memref<64x32xf32, #tpu.memory_space<vmem>>, vector<8x32xf32>
    tpu.vector_store %arg6[%c16_19, %c0_20], %62 {strides = array<i32>} : memref<64x32xf32, #tpu.memory_space<vmem>>, vector<8x32xf32>,
    %c24 = arith.constant 24 : index
    %c0_21 = arith.constant 0 : index
    %64 = vector.load %arg0[%c24, %c0_21] : memref<64x128xf32, #tpu.memory_space<vmem>>, vector<8x128xf32>
    %cst_22 = arith.constant dense<0.000000e+00> : vector<8x128xf32>
    %65 = tpu.matmul %62, %0, %cst_22 {dimension_numbers = #tpu.dot_dimension_numbers<[1], [0], [0], [1], [0, 0, 1, 1], [], []>} : vector<8x32xf32>, vector<32x128xf32>, vector<8x128xf32> -> vector<8x128xf32>
    %66 = arith.addf %64, %65 : vector<8x128xf32>
    %67 = vector.extract_strided_slice %66 {offsets = [0, 0], sizes = [8, 96], strides = [1, 1]} : vector<8x128xf32> to vector<8x96xf32>
    %68 = arith.negf %67 : vector<8x96xf32>
    %69 = math.exp %68 : vector<8x96xf32>
    %cst_23 = arith.constant 1.000000e+00 : f32
    %70 = vector.broadcast %cst_23 : f32 to vector<8x96xf32>
    %71 = arith.addf %70, %69 : vector<8x96xf32>
    %72 = arith.divf %70, %71 : vector<8x96xf32>
    %73 = vector.extract_strided_slice %66 {offsets = [0, 96], sizes = [8, 32], strides = [1, 1]} : vector<8x128xf32> to vector<8x32xf32>
    %74 = math.tanh %73 : vector<8x32xf32>
    %75 = vector.extract_strided_slice %72 {offsets = [0, 0], sizes = [8, 32], strides = [1, 1]} : vector<8x96xf32> to vector<8x32xf32>
    %76 = vector.extract_strided_slice %72 {offsets = [0, 32], sizes = [8, 32], strides = [1, 1]} : vector<8x96xf32> to vector<8x32xf32>
    %77 = vector.extract_strided_slice %72 {offsets = [0, 64], sizes = [8, 32], strides = [1, 1]} : vector<8x96xf32> to vector<8x32xf32>
    %78 = arith.mulf %76, %60 : vector<8x32xf32>
    %79 = arith.mulf %75, %74 : vector<8x32xf32>
    %80 = arith.addf %78, %79 : vector<8x32xf32>
    %81 = math.tanh %80 : vector<8x32xf32>
    %82 = arith.mulf %77, %81 : vector<8x32xf32>
    %c24_24 = arith.constant 24 : index
    %c0_25 = arith.constant 0 : index
    %83 = vector.load %arg6[%c24_24, %c0_25] : memref<64x32xf32, #tpu.memory_space<vmem>>, vector<8x32xf32>
    tpu.vector_store %arg6[%c24_24, %c0_25], %82 {strides = array<i32>} : memref<64x32xf32, #tpu.memory_space<vmem>>, vector<8x32xf32>,
    %c32 = arith.constant 32 : index
    %c0_26 = arith.constant 0 : index
    %84 = vector.load %arg0[%c32, %c0_26] : memref<64x128xf32, #tpu.memory_space<vmem>>, vector<8x128xf32>
    %cst_27 = arith.constant dense<0.000000e+00> : vector<8x128xf32>
    %85 = tpu.matmul %82, %0, %cst_27 {dimension_numbers = #tpu.dot_dimension_numbers<[1], [0], [0], [1], [0, 0, 1, 1], [], []>} : vector<8x32xf32>, vector<32x128xf32>, vector<8x128xf32> -> vector<8x128xf32>
    %86 = arith.addf %84, %85 : vector<8x128xf32>
    %87 = vector.extract_strided_slice %86 {offsets = [0, 0], sizes = [8, 96], strides = [1, 1]} : vector<8x128xf32> to vector<8x96xf32>
    %88 = arith.negf %87 : vector<8x96xf32>
    %89 = math.exp %88 : vector<8x96xf32>
    %cst_28 = arith.constant 1.000000e+00 : f32
    %90 = vector.broadcast %cst_28 : f32 to vector<8x96xf32>
    %91 = arith.addf %90, %89 : vector<8x96xf32>
    %92 = arith.divf %90, %91 : vector<8x96xf32>
    %93 = vector.extract_strided_slice %86 {offsets = [0, 96], sizes = [8, 32], strides = [1, 1]} : vector<8x128xf32> to vector<8x32xf32>
    %94 = math.tanh %93 : vector<8x32xf32>
    %95 = vector.extract_strided_slice %92 {offsets = [0, 0], sizes = [8, 32], strides = [1, 1]} : vector<8x96xf32> to vector<8x32xf32>
    %96 = vector.extract_strided_slice %92 {offsets = [0, 32], sizes = [8, 32], strides = [1, 1]} : vector<8x96xf32> to vector<8x32xf32>
    %97 = vector.extract_strided_slice %92 {offsets = [0, 64], sizes = [8, 32], strides = [1, 1]} : vector<8x96xf32> to vector<8x32xf32>
    %98 = arith.mulf %96, %80 : vector<8x32xf32>
    %99 = arith.mulf %95, %94 : vector<8x32xf32>
    %100 = arith.addf %98, %99 : vector<8x32xf32>
    %101 = math.tanh %100 : vector<8x32xf32>
    %102 = arith.mulf %97, %101 : vector<8x32xf32>
    %c32_29 = arith.constant 32 : index
    %c0_30 = arith.constant 0 : index
    %103 = vector.load %arg6[%c32_29, %c0_30] : memref<64x32xf32, #tpu.memory_space<vmem>>, vector<8x32xf32>
    tpu.vector_store %arg6[%c32_29, %c0_30], %102 {strides = array<i32>} : memref<64x32xf32, #tpu.memory_space<vmem>>, vector<8x32xf32>,
    %c40 = arith.constant 40 : index
    %c0_31 = arith.constant 0 : index
    %104 = vector.load %arg0[%c40, %c0_31] : memref<64x128xf32, #tpu.memory_space<vmem>>, vector<8x128xf32>
    %cst_32 = arith.constant dense<0.000000e+00> : vector<8x128xf32>
    %105 = tpu.matmul %102, %0, %cst_32 {dimension_numbers = #tpu.dot_dimension_numbers<[1], [0], [0], [1], [0, 0, 1, 1], [], []>} : vector<8x32xf32>, vector<32x128xf32>, vector<8x128xf32> -> vector<8x128xf32>
    %106 = arith.addf %104, %105 : vector<8x128xf32>
    %107 = vector.extract_strided_slice %106 {offsets = [0, 0], sizes = [8, 96], strides = [1, 1]} : vector<8x128xf32> to vector<8x96xf32>
    %108 = arith.negf %107 : vector<8x96xf32>
    %109 = math.exp %108 : vector<8x96xf32>
    %cst_33 = arith.constant 1.000000e+00 : f32
    %110 = vector.broadcast %cst_33 : f32 to vector<8x96xf32>
    %111 = arith.addf %110, %109 : vector<8x96xf32>
    %112 = arith.divf %110, %111 : vector<8x96xf32>
    %113 = vector.extract_strided_slice %106 {offsets = [0, 96], sizes = [8, 32], strides = [1, 1]} : vector<8x128xf32> to vector<8x32xf32>
    %114 = math.tanh %113 : vector<8x32xf32>
    %115 = vector.extract_strided_slice %112 {offsets = [0, 0], sizes = [8, 32], strides = [1, 1]} : vector<8x96xf32> to vector<8x32xf32>
    %116 = vector.extract_strided_slice %112 {offsets = [0, 32], sizes = [8, 32], strides = [1, 1]} : vector<8x96xf32> to vector<8x32xf32>
    %117 = vector.extract_strided_slice %112 {offsets = [0, 64], sizes = [8, 32], strides = [1, 1]} : vector<8x96xf32> to vector<8x32xf32>
    %118 = arith.mulf %116, %100 : vector<8x32xf32>
    %119 = arith.mulf %115, %114 : vector<8x32xf32>
    %120 = arith.addf %118, %119 : vector<8x32xf32>
    %121 = math.tanh %120 : vector<8x32xf32>
    %122 = arith.mulf %117, %121 : vector<8x32xf32>
    %c40_34 = arith.constant 40 : index
    %c0_35 = arith.constant 0 : index
    %123 = vector.load %arg6[%c40_34, %c0_35] : memref<64x32xf32, #tpu.memory_space<vmem>>, vector<8x32xf32>
    tpu.vector_store %arg6[%c40_34, %c0_35], %122 {strides = array<i32>} : memref<64x32xf32, #tpu.memory_space<vmem>>, vector<8x32xf32>,
    %c48 = arith.constant 48 : index
    %c0_36 = arith.constant 0 : index
    %124 = vector.load %arg0[%c48, %c0_36] : memref<64x128xf32, #tpu.memory_space<vmem>>, vector<8x128xf32>
    %cst_37 = arith.constant dense<0.000000e+00> : vector<8x128xf32>
    %125 = tpu.matmul %122, %0, %cst_37 {dimension_numbers = #tpu.dot_dimension_numbers<[1], [0], [0], [1], [0, 0, 1, 1], [], []>} : vector<8x32xf32>, vector<32x128xf32>, vector<8x128xf32> -> vector<8x128xf32>
    %126 = arith.addf %124, %125 : vector<8x128xf32>
    %127 = vector.extract_strided_slice %126 {offsets = [0, 0], sizes = [8, 96], strides = [1, 1]} : vector<8x128xf32> to vector<8x96xf32>
    %128 = arith.negf %127 : vector<8x96xf32>
    %129 = math.exp %128 : vector<8x96xf32>
    %cst_38 = arith.constant 1.000000e+00 : f32
    %130 = vector.broadcast %cst_38 : f32 to vector<8x96xf32>
    %131 = arith.addf %130, %129 : vector<8x96xf32>
    %132 = arith.divf %130, %131 : vector<8x96xf32>
    %133 = vector.extract_strided_slice %126 {offsets = [0, 96], sizes = [8, 32], strides = [1, 1]} : vector<8x128xf32> to vector<8x32xf32>
    %134 = math.tanh %133 : vector<8x32xf32>
    %135 = vector.extract_strided_slice %132 {offsets = [0, 0], sizes = [8, 32], strides = [1, 1]} : vector<8x96xf32> to vector<8x32xf32>
    %136 = vector.extract_strided_slice %132 {offsets = [0, 32], sizes = [8, 32], strides = [1, 1]} : vector<8x96xf32> to vector<8x32xf32>
    %137 = vector.extract_strided_slice %132 {offsets = [0, 64], sizes = [8, 32], strides = [1, 1]} : vector<8x96xf32> to vector<8x32xf32>
    %138 = arith.mulf %136, %120 : vector<8x32xf32>
    %139 = arith.mulf %135, %134 : vector<8x32xf32>
    %140 = arith.addf %138, %139 : vector<8x32xf32>
    %141 = math.tanh %140 : vector<8x32xf32>
    %142 = arith.mulf %137, %141 : vector<8x32xf32>
    %c48_39 = arith.constant 48 : index
    %c0_40 = arith.constant 0 : index
    %143 = vector.load %arg6[%c48_39, %c0_40] : memref<64x32xf32, #tpu.memory_space<vmem>>, vector<8x32xf32>
    tpu.vector_store %arg6[%c48_39, %c0_40], %142 {strides = array<i32>} : memref<64x32xf32, #tpu.memory_space<vmem>>, vector<8x32xf32>,
    %c56 = arith.constant 56 : index
    %c0_41 = arith.constant 0 : index
    %144 = vector.load %arg0[%c56, %c0_41] : memref<64x128xf32, #tpu.memory_space<vmem>>, vector<8x128xf32>
    %cst_42 = arith.constant dense<0.000000e+00> : vector<8x128xf32>
    %145 = tpu.matmul %142, %0, %cst_42 {dimension_numbers = #tpu.dot_dimension_numbers<[1], [0], [0], [1], [0, 0, 1, 1], [], []>} : vector<8x32xf32>, vector<32x128xf32>, vector<8x128xf32> -> vector<8x128xf32>
    %146 = arith.addf %144, %145 : vector<8x128xf32>
    %147 = vector.extract_strided_slice %146 {offsets = [0, 0], sizes = [8, 96], strides = [1, 1]} : vector<8x128xf32> to vector<8x96xf32>
    %148 = arith.negf %147 : vector<8x96xf32>
    %149 = math.exp %148 : vector<8x96xf32>
    %cst_43 = arith.constant 1.000000e+00 : f32
    %150 = vector.broadcast %cst_43 : f32 to vector<8x96xf32>
    %151 = arith.addf %150, %149 : vector<8x96xf32>
    %152 = arith.divf %150, %151 : vector<8x96xf32>
    %153 = vector.extract_strided_slice %146 {offsets = [0, 96], sizes = [8, 32], strides = [1, 1]} : vector<8x128xf32> to vector<8x32xf32>
    %154 = math.tanh %153 : vector<8x32xf32>
    %155 = vector.extract_strided_slice %152 {offsets = [0, 0], sizes = [8, 32], strides = [1, 1]} : vector<8x96xf32> to vector<8x32xf32>
    %156 = vector.extract_strided_slice %152 {offsets = [0, 32], sizes = [8, 32], strides = [1, 1]} : vector<8x96xf32> to vector<8x32xf32>
    %157 = vector.extract_strided_slice %152 {offsets = [0, 64], sizes = [8, 32], strides = [1, 1]} : vector<8x96xf32> to vector<8x32xf32>
    %158 = arith.mulf %156, %140 : vector<8x32xf32>
    %159 = arith.mulf %155, %154 : vector<8x32xf32>
    %160 = arith.addf %158, %159 : vector<8x32xf32>
    %161 = math.tanh %160 : vector<8x32xf32>
    %162 = arith.mulf %157, %161 : vector<8x32xf32>
    %c56_44 = arith.constant 56 : index
    %c0_45 = arith.constant 0 : index
    %163 = vector.load %arg6[%c56_44, %c0_45] : memref<64x32xf32, #tpu.memory_space<vmem>>, vector<8x32xf32>
    tpu.vector_store %arg6[%c56_44, %c0_45], %162 {strides = array<i32>} : memref<64x32xf32, #tpu.memory_space<vmem>>, vector<8x32xf32>,
    %c0_46 = arith.constant 0 : index
    %c0_47 = arith.constant 0 : index
    %164 = vector.load %arg5[%c0_46, %c0_47] : memref<16x32xf32, #tpu.memory_space<vmem>>, vector<8x32xf32>
    tpu.vector_store %arg5[%c0_46, %c0_47], %162 {strides = array<i32>} : memref<16x32xf32, #tpu.memory_space<vmem>>, vector<8x32xf32>,
    %c8_48 = arith.constant 8 : index
    %c0_49 = arith.constant 0 : index
    %165 = vector.load %arg5[%c8_48, %c0_49] : memref<16x32xf32, #tpu.memory_space<vmem>>, vector<8x32xf32>
    tpu.vector_store %arg5[%c8_48, %c0_49], %160 {strides = array<i32>} : memref<16x32xf32, #tpu.memory_space<vmem>>, vector<8x32xf32>,
    %c0_50 = arith.constant 0 : index
    %c0_51 = arith.constant 0 : index
    %166 = vector.load %arg6[%c0_50, %c0_51] : memref<64x32xf32, #tpu.memory_space<vmem>>, vector<64x32xf32>
    %cst_52 = arith.constant dense<0.000000e+00> : vector<64x128xf32>
    %167 = tpu.matmul %166, %1, %cst_52 {dimension_numbers = #tpu.dot_dimension_numbers<[1], [0], [0], [1], [0, 0, 1, 1], [], []>} : vector<64x32xf32>, vector<32x128xf32>, vector<64x128xf32> -> vector<64x128xf32>
    %c0_53 = arith.constant 0 : index
    %c0_54 = arith.constant 0 : index
    %168 = vector.load %arg3[%c0_53, %c0_54] : memref<1x128xf32, #tpu.memory_space<vmem>>, vector<1x128xf32>
    %169 = vector.broadcast %168 : vector<1x128xf32> to vector<64x128xf32>
    %170 = arith.addf %167, %169 : vector<64x128xf32>
    %c0_55 = arith.constant 0 : index
    %c0_56 = arith.constant 0 : index
    %171 = vector.load %arg4[%c0_55, %c0_56] : memref<64x128xf32, #tpu.memory_space<vmem>>, vector<64x128xf32>
    tpu.vector_store %arg4[%c0_55, %c0_56], %170 {strides = array<i32>} : memref<64x128xf32, #tpu.memory_space<vmem>>, vector<64x128xf32>,
    return
  }
}

</mosaic_0001>

<llo_original>
// kernel: tpu_custom_call.1
$region0: #{tpu_custom_call.1}
  #allocation0 [shape = 'u32[]', space=smem, size = 0x4, offset = 0x4, fixed_abs, tag = 'smem constant byte address 0x4 - core index']
  #allocation1 [shape = 'u32[144,128]{1,0:T(1,128)}', space=vmem, size = 0x12000, scoped, tag = 'internal scratch']
  #allocation2 [shape = 'f32[64,32]{1,0:T(8,128)}', space=vmem, size = 0x8000, scoped, tag = 'scratch operand']
  %s0 = inlined_call_operand.hbm [shape: f32[64,128], index: 0, kind: input, shape index: {}]
  %s1 = inlined_call_operand.hbm [shape: f32[16,32], index: 1, kind: input, shape index: {}]
  %s2 = inlined_call_operand.hbm [shape: f32[32,256], index: 2, kind: input, shape index: {}]
  %s3 = inlined_call_operand.vmem [shape: f32[1,128], index: 3, kind: input, shape index: {}]
  %s4 = inlined_call_operand.hbm [shape: f32[64,128], index: 4, kind: output, shape index: {0}]
  %s5 = inlined_call_operand.hbm [shape: f32[16,32], index: 5, kind: output, shape index: {1}]
  %6 = xla_tuple %s4, %s5
  %s7 = sld [smem:[#allocation0]]
  $region46: #{tpu_custom_call.1} parent=0
    _
  %s9 = ssub.s32 1, %s7
  %s10 = scalar_select 0, %s9, %s7
  $region1: #{tpu_custom_call.1} parent=0
    #allocation3 [shape = 'u8[32768]{0}', space=vmem, size = 0x8000, scoped, tag = 'input window, operand 0, single buffered']
    #allocation4 [shape = 's32[1]{0}', space=sflag, size = 0x4, scoped, tag = 'scoped memory for tpu_custom_call.1']
    #allocation5 [shape = 's32[1]{0}', space=sflag, size = 0x4, scoped, tag = 'scoped memory for tpu_custom_call.1']
    #allocation6 [shape = 'u8[8192]{0}', space=vmem, size = 0x2000, scoped, tag = 'input window, operand 1, single buffered']
    #allocation7 [shape = 's32[1]{0}', space=sflag, size = 0x4, scoped, tag = 'scoped memory for tpu_custom_call.1']
    #allocation8 [shape = 'u8[32768]{0}', space=vmem, size = 0x8000, scoped, tag = 'input window, operand 2, single buffered']
    #allocation9 [shape = 'u8[32768]{0}', space=vmem, size = 0x8000, scoped, tag = 'output window, operand 0, single buffered']
    #allocation10 [shape = 'u8[8192]{0}', space=vmem, size = 0x2000, scoped, tag = 'output window, operand 1, single buffered']
    #allocation11 [shape = 's32[1]{0}', space=sflag, size = 0x4, scoped, tag = 'scoped memory for tpu_custom_call.1']
    %11 = vsyncpa [#allocation4], 0
    %12 = vsyncpa [#allocation7], 0
    %13 = vsyncpa [#allocation5], 0
    %14 = vsyncpa [#allocation11], 0
    // Predicated region
    $region2: #{tpu_custom_call.1} parent=1 // pred_check
      _
    $region3: #{tpu_custom_call.1} parent=1 // pred_check_branch
      %16 = sbr.rel (0) target = $region5
    $region4: #{tpu_custom_call.1} parent=1 // pred_region
      %s18 = ssub.s32 1024, 1024
      %19 = vsyncadd [#allocation4], %s18
      %s20 = sshll.u32 [#allocation3], 4
      %s21 = int_to_ptr.vmem [resolvable:$true] %s20
      %26 = dma.hbm_to_vmem [thread:$0]  %s0, 1024, %s21, [#allocation4], 128, 128, 8
    $region5: #{tpu_custom_call.1} parent=1 // pred_fallthru
      _
    // Predicated region
    $region6: #{tpu_custom_call.1} parent=1 // pred_check
      _
    $region7: #{tpu_custom_call.1} parent=1 // pred_check_branch
      %28 = sbr.rel (0) target = $region9
    $region8: #{tpu_custom_call.1} parent=1 // pred_region
      %s30 = ssub.s32 256, 256
      %31 = vsyncadd [#allocation7], %s30
      %s32 = sshll.u32 [#allocation6], 4
      %s33 = int_to_ptr.vmem [resolvable:$true] %s32
      %38 = dma.hbm_to_vmem [thread:$0]  %s1, 256, %s33, [#allocation7], 128, 128, 8
    $region9: #{tpu_custom_call.1} parent=1 // pred_fallthru
      _
    // Predicated region
    $region10: #{tpu_custom_call.1} parent=1 // pred_check
      _
    $region11: #{tpu_custom_call.1} parent=1 // pred_check_branch
      %40 = sbr.rel (0) target = $region13
    $region12: #{tpu_custom_call.1} parent=1 // pred_region
      %s42 = ssub.s32 1024, 1024
      %43 = vsyncadd [#allocation7], %s42
      %s44 = sshll.u32 [#allocation8], 4
      %s45 = int_to_ptr.vmem [resolvable:$true] %s44
      %50 = dma.hbm_to_vmem [thread:$0]  %s2, 1024, %s45, [#allocation7], 256, 256, 16
    $region13: #{tpu_custom_call.1} parent=1 // pred_fallthru
      _
    // Predicated region
    $region14: #{tpu_custom_call.1} parent=1 // pred_check
      _
    $region15: #{tpu_custom_call.1} parent=1 // pred_check_branch
      %52 = sbr.rel (0) target = $region17
    $region16: #{tpu_custom_call.1} parent=1 // pred_region
      _
    $region17: #{tpu_custom_call.1} parent=1 // pred_fallthru
      _
    // Predicated region
    $region18: #{tpu_custom_call.1} parent=1 // pred_check
      _
    $region19: #{tpu_custom_call.1} parent=1 // pred_check_branch
      %54 = sbr.rel (0) target = $region21
    $region20: #{tpu_custom_call.1} parent=1 // pred_region
      %55 = dma.done [#allocation4], 1024
    $region21: #{tpu_custom_call.1} parent=1 // pred_fallthru
      _
    // Predicated region
    $region22: #{tpu_custom_call.1} parent=1 // pred_check
      _
    $region23: #{tpu_custom_call.1} parent=1 // pred_check_branch
      %57 = sbr.rel (0) target = $region25
    $region24: #{tpu_custom_call.1} parent=1 // pred_region
      %58 = dma.done [#allocation7], 256
    $region25: #{tpu_custom_call.1} parent=1 // pred_fallthru
      _
    // Predicated region
    $region26: #{tpu_custom_call.1} parent=1 // pred_check
      _
    $region27: #{tpu_custom_call.1} parent=1 // pred_check_branch
      %60 = sbr.rel (0) target = $region29
    $region28: #{tpu_custom_call.1} parent=1 // pred_region
      %61 = dma.done [#allocation7], 1024
    $region29: #{tpu_custom_call.1} parent=1 // pred_fallthru
      _
    %v62 = vld [vmem:[#allocation8] sm:$0xff]
    %v63 = vld [vmem:[#allocation8 + $0x10] sm:$0xff]
    %v64 = vld [vmem:[#allocation8 + $0x20] sm:$0xff]
    %v65 = vld [vmem:[#allocation8 + $0x30] sm:$0xff]
    %v66 = vld [vmem:[#allocation8 + $0x8] sm:$0xff]
    %v67 = vld [vmem:[#allocation8 + $0x18] sm:$0xff]
    %v68 = vld [vmem:[#allocation8 + $0x28] sm:$0xff]
    %v69 = vld [vmem:[#allocation8 + $0x38] sm:$0xff]
    %v70 = vld [vmem:[#allocation6] sm:$0xff]
    %v71 = vld [vmem:[#allocation6 + $0x8] sm:$0xff]
    %v72 = vld [vmem:[#allocation3] sm:$0xff]
    %vm73 = vcmask 261120
    %v75 = vsel %vm73, %v70, 0
    %77 = vmatprep.subr.mxu0 0.0
    %78 = vmatpush1.msra.mxu0 %v62
    %79 = vmatprep.subr.mxu0 0.0
    %80 = vmatpush1.msra.mxu0 %v63
    %81 = vmatprep.subr.mxu0 0.0
    %82 = vmatpush1.msra.mxu0 %v64
    %83 = vmatprep.subr.mxu0 0.0
    %84 = vmatpush1.msra.mxu0 %v65
    %85 = vmatprep.subr.mxu0 0.0
    %86 = vmatpush1.msra.mxu0 0.0
    %87 = vmatprep.subr.mxu0 0.0
    %88 = vmatpush1.msra.mxu0 0.0
    %89 = vmatprep.subr.mxu0 0.0
    %90 = vmatpush1.msra.mxu0 0.0
    %91 = vmatprep.subr.mxu0 0.0
    %92 = vmatpush1.msra.mxu0 0.0
    %93 = vmatprep.subr.mxu0 0.0
    %94 = vmatpush1.msra.mxu0 0.0
    %95 = vmatprep.subr.mxu0 0.0
    %96 = vmatpush1.msra.mxu0 0.0
    %97 = vmatprep.subr.mxu0 0.0
    %98 = vmatpush1.msra.mxu0 0.0
    %99 = vmatprep.subr.mxu0 0.0
    %100 = vmatpush1.msra.mxu0 0.0
    %101 = vmatprep.subr.mxu0 0.0
    %102 = vmatpush1.msra.mxu0 0.0
    %103 = vmatprep.subr.mxu0 0.0
    %104 = vmatpush1.msra.mxu0 0.0
    %105 = vmatprep.subr.mxu0 0.0
    %106 = vmatpush1.msra.mxu0 0.0
    %107 = vmatprep.subr.mxu0 0.0
    %108 = vmatpush1.msra.mxu0 0.0
    %109 = vmatprep.subr.mxu0 0.0
    %110 = vmatpush1.msra.mxu0 0.0
    %111 = vmatprep.subr.mxu0 0.0
    %112 = vmatpush1.msra.mxu0 0.0
    %113 = vmatprep.subr.mxu0 0.0
    %114 = vmatpush1.msra.mxu0 0.0
    %115 = vmatprep.subr.mxu0 0.0
    %116 = vmatpush1.msra.mxu0 0.0
    %117 = vmatprep.subr.mxu0 0.0
    %118 = vmatpush1.msra.mxu0 0.0
    %119 = vmatprep.subr.mxu0 0.0
    %120 = vmatpush1.msra.mxu0 0.0
    %121 = vmatprep.subr.mxu0 0.0
    %122 = vmatpush1.msra.mxu0 0.0
    %123 = vmatprep.subr.mxu0 0.0
    %124 = vmatpush1.msra.mxu0 0.0
    %125 = vmatprep.subr.mxu0 0.0
    %126 = vmatpush1.msra.mxu0 0.0
    %127 = vmatprep.subr.mxu0 0.0
    %128 = vmatpush1.msra.mxu0 0.0
    %129 = vmatprep.subr.mxu0 0.0
    %130 = vmatpush1.msra.mxu0 0.0
    %131 = vmatprep.subr.mxu0 0.0
    %132 = vmatpush1.msra.mxu0 0.0
    %133 = vmatprep.subr.mxu0 0.0
    %134 = vmatpush1.msra.mxu0 0.0
    %135 = vmatprep.subr.mxu0 0.0
    %136 = vmatpush1.msra.mxu0 0.0
    %137 = vmatprep.subr.mxu0 0.0
    %138 = vmatpush1.msra.mxu0 0.0
    %139 = vmatprep.subr.mxu0 0.0
    %140 = vmatpush1.msra.mxu0 0.0
    %141 = vmatprep.mubr.f32.mxu0 0.0
    %142 = vmatmul.mubr.f32.gmra.mrb[0].mxu0 %v75
    %v143 = vpop.f32.mrb[0].mxu0
    %v144 = vadd.f32 0.0, %v143
    %v145 = vpop.f32.mrb[0].mxu0
    %146 = vdwg.mxu0
    %v147 = vadd.f32 %v72, %v144
    %v148 = vxor.u32 %v147, 2147483648
    %v149 = vmul.f32 %v148, 1.442695
    %v150 = vpow.pop %v149
    %v151 = vadd.f32 %v150, 1.0
    %v152 = vrcp.pop %v151
    %v153 = vmul.f32 1.0, %v152
    %v154 = vtanh.pop %v147
    %156 = vrot.lane.b32.xlu0 %v71, 32
    %v157 = vpop.permute.xlu0 %156
    %v159 = vmul.f32 %v153, %v157
    %161 = vrot.lane.b32.xlu0 %v154, 32
    %v162 = vpop.permute.xlu0 %161
    %v164 = vmul.f32 %v153, %v162
    %166 = vrot.lane.b32.xlu0 %v164, 32
    %v167 = vpop.permute.xlu0 %166
    %v169 = vadd.f32 %v159, %v167
    %v170 = vtanh.pop %v169
    %172 = vrot.lane.b32.xlu0 %v170, 32
    %v173 = vpop.permute.xlu0 %172
    %v175 = vmul.f32 %v153, %v173
    %177 = vrot.lane.b32.xlu0 %v175, 64
    %v178 = vpop.permute.xlu0 %177
    %180 = vst.msk [vmem:[#allocation2] sm:$0xff] %vm73, %v178
    %v181 = vld [vmem:[#allocation3 + $0x8] sm:$0xff]
    %v182 = vsel %vm73, %v178, 0
    %184 = vmatprep.subr.mxu0 0.0
    %185 = vmatpush1.msra.mxu0 %v62
    %186 = vmatprep.subr.mxu0 0.0
    %187 = vmatpush1.msra.mxu0 %v63
    %188 = vmatprep.subr.mxu0 0.0
    %189 = vmatpush1.msra.mxu0 %v64
    %190 = vmatprep.subr.mxu0 0.0
    %191 = vmatpush1.msra.mxu0 %v65
    %192 = vmatprep.subr.mxu0 0.0
    %193 = vmatpush1.msra.mxu0 0.0
    %194 = vmatprep.subr.mxu0 0.0
    %195 = vmatpush1.msra.mxu0 0.0
    %196 = vmatprep.subr.mxu0 0.0
    %197 = vmatpush1.msra.mxu0 0.0
    %198 = vmatprep.subr.mxu0 0.0
    %199 = vmatpush1.msra.mxu0 0.0
    %200 = vmatprep.subr.mxu0 0.0
    %201 = vmatpush1.msra.mxu0 0.0
    %202 = vmatprep.subr.mxu0 0.0
    %203 = vmatpush1.msra.mxu0 0.0
    %204 = vmatprep.subr.mxu0 0.0
    %205 = vmatpush1.msra.mxu0 0.0
    %206 = vmatprep.subr.mxu0 0.0
    %207 = vmatpush1.msra.mxu0 0.0
    %208 = vmatprep.subr.mxu0 0.0
    %209 = vmatpush1.msra.mxu0 0.0
    %210 = vmatprep.subr.mxu0 0.0
    %211 = vmatpush1.msra.mxu0 0.0
    %212 = vmatprep.subr.mxu0 0.0
    %213 = vmatpush1.msra.mxu0 0.0
    %214 = vmatprep.subr.mxu0 0.0
    %215 = vmatpush1.msra.mxu0 0.0
    %216 = vmatprep.subr.mxu0 0.0
    %217 = vmatpush1.msra.mxu0 0.0
    %218 = vmatprep.subr.mxu0 0.0
    %219 = vmatpush1.msra.mxu0 0.0
    %220 = vmatprep.subr.mxu0 0.0
    %221 = vmatpush1.msra.mxu0 0.0
    %222 = vmatprep.subr.mxu0 0.0
    %223 = vmatpush1.msra.mxu0 0.0
    %224 = vmatprep.subr.mxu0 0.0
    %225 = vmatpush1.msra.mxu0 0.0
    %226 = vmatprep.subr.mxu0 0.0
    %227 = vmatpush1.msra.mxu0 0.0
    %228 = vmatprep.subr.mxu0 0.0
    %229 = vmatpush1.msra.mxu0 0.0
    %230 = vmatprep.subr.mxu0 0.0
    %231 = vmatpush1.msra.mxu0 0.0
    %232 = vmatprep.subr.mxu0 0.0
    %233 = vmatpush1.msra.mxu0 0.0
    %234 = vmatprep.subr.mxu0 0.0
    %235 = vmatpush1.msra.mxu0 0.0
    %236 = vmatprep.subr.mxu0 0.0
    %237 = vmatpush1.msra.mxu0 0.0
    %238 = vmatprep.subr.mxu0 0.0
    %239 = vmatpush1.msra.mxu0 0.0
    %240 = vmatprep.subr.mxu0 0.0
    %241 = vmatpush1.msra.mxu0 0.0
    %242 = vmatprep.subr.mxu0 0.0
    %243 = vmatpush1.msra.mxu0 0.0
    %244 = vmatprep.subr.mxu0 0.0
    %245 = vmatpush1.msra.mxu0 0.0
    %246 = vmatprep.subr.mxu0 0.0
    %247 = vmatpush1.msra.mxu0 0.0
    %248 = vmatprep.mubr.f32.mxu0 0.0
    %249 = vmatmul.mubr.f32.gmra.mrb[0].mxu0 %v182
    %v250 = vpop.f32.mrb[0].mxu0
    %v251 = vadd.f32 0.0, %v250
    %v252 = vpop.f32.mrb[0].mxu0
    %253 = vdwg.mxu0
    %v254 = vadd.f32 %v181, %v251
    %v255 = vxor.u32 %v254, 2147483648
    %v256 = vmul.f32 %v255, 1.442695
    %v257 = vpow.pop %v256
    %v258 = vadd.f32 %v257, 1.0
    %v259 = vrcp.pop %v258
    %v260 = vmul.f32 1.0, %v259
    %v261 = vtanh.pop %v254
    %v262 = vmul.f32 %v260, %v169
    %264 = vrot.lane.b32.xlu0 %v261, 32
    %v265 = vpop.permute.xlu0 %264
    %v267 = vmul.f32 %v260, %v265
    %269 = vrot.lane.b32.xlu0 %v267, 32
    %v270 = vpop.permute.xlu0 %269
    %v272 = vadd.f32 %v262, %v270
    %v273 = vtanh.pop %v272
    %275 = vrot.lane.b32.xlu0 %v273, 32
    %v276 = vpop.permute.xlu0 %275
    %v278 = vmul.f32 %v260, %v276
    %280 = vrot.lane.b32.xlu0 %v278, 64
    %v281 = vpop.permute.xlu0 %280
    %283 = vst.msk [vmem:[#allocation2 + $0x8] sm:$0xff] %vm73, %v281
    %v284 = vld [vmem:[#allocation3 + $0x10] sm:$0xff]
    %v285 = vsel %vm73, %v281, 0
    %287 = vmatprep.subr.mxu0 0.0
    %288 = vmatpush1.msra.mxu0 %v62
    %289 = vmatprep.subr.mxu0 0.0
    %290 = vmatpush1.msra.mxu0 %v63
    %291 = vmatprep.subr.mxu0 0.0
    %292 = vmatpush1.msra.mxu0 %v64
    %293 = vmatprep.subr.mxu0 0.0
    %294 = vmatpush1.msra.mxu0 %v65
    %295 = vmatprep.subr.mxu0 0.0
    %296 = vmatpush1.msra.mxu0 0.0
    %297 = vmatprep.subr.mxu0 0.0
    %298 = vmatpush1.msra.mxu0 0.0
    %299 = vmatprep.subr.mxu0 0.0
    %300 = vmatpush1.msra.mxu0 0.0
    %301 = vmatprep.subr.mxu0 0.0
    %302 = vmatpush1.msra.mxu0 0.0
    %303 = vmatprep.subr.mxu0 0.0
    %304 = vmatpush1.msra.mxu0 0.0
    %305 = vmatprep.subr.mxu0 0.0
    %306 = vmatpush1.msra.mxu0 0.0
    %307 = vmatprep.subr.mxu0 0.0
    %308 = vmatpush1.msra.mxu0 0.0
    %309 = vmatprep.subr.mxu0 0.0
    %310 = vmatpush1.msra.mxu0 0.0
    %311 = vmatprep.subr.mxu0 0.0
    %312 = vmatpush1.msra.mxu0 0.0
    %313 = vmatprep.subr.mxu0 0.0
    %314 = vmatpush1.msra.mxu0 0.0
    %315 = vmatprep.subr.mxu0 0.0
    %316 = vmatpush1.msra.mxu0 0.0
    %317 = vmatprep.subr.mxu0 0.0
    %318 = vmatpush1.msra.mxu0 0.0
    %319 = vmatprep.subr.mxu0 0.0
    %320 = vmatpush1.msra.mxu0 0.0
    %321 = vmatprep.subr.mxu0 0.0
    %322 = vmatpush1.msra.mxu0 0.0
    %323 = vmatprep.subr.mxu0 0.0
    %324 = vmatpush1.msra.mxu0 0.0
    %325 = vmatprep.subr.mxu0 0.0
    %326 = vmatpush1.msra.mxu0 0.0
    %327 = vmatprep.subr.mxu0 0.0
    %328 = vmatpush1.msra.mxu0 0.0
    %329 = vmatprep.subr.mxu0 0.0
    %330 = vmatpush1.msra.mxu0 0.0
    %331 = vmatprep.subr.mxu0 0.0
    %332 = vmatpush1.msra.mxu0 0.0
    %333 = vmatprep.subr.mxu0 0.0
    %334 = vmatpush1.msra.mxu0 0.0
    %335 = vmatprep.subr.mxu0 0.0
    %336 = vmatpush1.msra.mxu0 0.0
    %337 = vmatprep.subr.mxu0 0.0
    %338 = vmatpush1.msra.mxu0 0.0
    %339 = vmatprep.subr.mxu0 0.0
    %340 = vmatpush1.msra.mxu0 0.0
    %341 = vmatprep.subr.mxu0 0.0
    %342 = vmatpush1.msra.mxu0 0.0
    %343 = vmatprep.subr.mxu0 0.0
    %344 = vmatpush1.msra.mxu0 0.0
    %345 = vmatprep.subr.mxu0 0.0
    %346 = vmatpush1.msra.mxu0 0.0
    %347 = vmatprep.subr.mxu0 0.0
    %348 = vmatpush1.msra.mxu0 0.0
    %349 = vmatprep.subr.mxu0 0.0
    %350 = vmatpush1.msra.mxu0 0.0
    %351 = vmatprep.mubr.f32.mxu0 0.0
    %352 = vmatmul.mubr.f32.gmra.mrb[0].mxu0 %v285
    %v353 = vpop.f32.mrb[0].mxu0
    %v354 = vadd.f32 0.0, %v353
    %v355 = vpop.f32.mrb[0].mxu0
    %356 = vdwg.mxu0
    %v357 = vadd.f32 %v284, %v354
    %v358 = vxor.u32 %v357, 2147483648
    %v359 = vmul.f32 %v358, 1.442695
    %v360 = vpow.pop %v359
    %v361 = vadd.f32 %v360, 1.0
    %v362 = vrcp.pop %v361
    %v363 = vmul.f32 1.0, %v362
    %v364 = vtanh.pop %v357
    %v365 = vmul.f32 %v363, %v272
    %367 = vrot.lane.b32.xlu0 %v364, 32
    %v368 = vpop.permute.xlu0 %367
    %v370 = vmul.f32 %v363, %v368
    %372 = vrot.lane.b32.xlu0 %v370, 32
    %v373 = vpop.permute.xlu0 %372
    %v375 = vadd.f32 %v365, %v373
    %v376 = vtanh.pop %v375
    %378 = vrot.lane.b32.xlu0 %v376, 32
    %v379 = vpop.permute.xlu0 %378
    %v381 = vmul.f32 %v363, %v379
    %383 = vrot.lane.b32.xlu0 %v381, 64
    %v384 = vpop.permute.xlu0 %383
    %386 = vst.msk [vmem:[#allocation2 + $0x10] sm:$0xff] %vm73, %v384
    %v387 = vld [vmem:[#allocation3 + $0x18] sm:$0xff]
    %v388 = vsel %vm73, %v384, 0
    %390 = vmatprep.subr.mxu0 0.0
    %391 = vmatpush1.msra.mxu0 %v62
    %392 = vmatprep.subr.mxu0 0.0
    %393 = vmatpush1.msra.mxu0 %v63
    %394 = vmatprep.subr.mxu0 0.0
    %395 = vmatpush1.msra.mxu0 %v64
    %396 = vmatprep.subr.mxu0 0.0
    %397 = vmatpush1.msra.mxu0 %v65
    %398 = vmatprep.subr.mxu0 0.0
    %399 = vmatpush1.msra.mxu0 0.0
    %400 = vmatprep.subr.mxu0 0.0
    %401 = vmatpush1.msra.mxu0 0.0
    %402 = vmatprep.subr.mxu0 0.0
    %403 = vmatpush1.msra.mxu0 0.0
    %404 = vmatprep.subr.mxu0 0.0
    %405 = vmatpush1.msra.mxu0 0.0
    %406 = vmatprep.subr.mxu0 0.0
    %407 = vmatpush1.msra.mxu0 0.0
    %408 = vmatprep.subr.mxu0 0.0
    %409 = vmatpush1.msra.mxu0 0.0
    %410 = vmatprep.subr.mxu0 0.0
    %411 = vmatpush1.msra.mxu0 0.0
    %412 = vmatprep.subr.mxu0 0.0
    %413 = vmatpush1.msra.mxu0 0.0
    %414 = vmatprep.subr.mxu0 0.0
    %415 = vmatpush1.msra.mxu0 0.0
    %416 = vmatprep.subr.mxu0 0.0
    %417 = vmatpush1.msra.mxu0 0.0
    %418 = vmatprep.subr.mxu0 0.0
    %419 = vmatpush1.msra.mxu0 0.0
    %420 = vmatprep.subr.mxu0 0.0
    %421 = vmatpush1.msra.mxu0 0.0
    %422 = vmatprep.subr.mxu0 0.0
    %423 = vmatpush1.msra.mxu0 0.0
    %424 = vmatprep.subr.mxu0 0.0
    %425 = vmatpush1.msra.mxu0 0.0
    %426 = vmatprep.subr.mxu0 0.0
    %427 = vmatpush1.msra.mxu0 0.0
    %428 = vmatprep.subr.mxu0 0.0
    %429 = vmatpush1.msra.mxu0 0.0
    %430 = vmatprep.subr.mxu0 0.0
    %431 = vmatpush1.msra.mxu0 0.0
    %432 = vmatprep.subr.mxu0 0.0
    %433 = vmatpush1.msra.mxu0 0.0
    %434 = vmatprep.subr.mxu0 0.0
    %435 = vmatpush1.msra.mxu0 0.0
    %436 = vmatprep.subr.mxu0 0.0
    %437 = vmatpush1.msra.mxu0 0.0
    %438 = vmatprep.subr.mxu0 0.0
    %439 = vmatpush1.msra.mxu0 0.0
    %440 = vmatprep.subr.mxu0 0.0
    %441 = vmatpush1.msra.mxu0 0.0
    %442 = vmatprep.subr.mxu0 0.0
    %443 = vmatpush1.msra.mxu0 0.0
    %444 = vmatprep.subr.mxu0 0.0
    %445 = vmatpush1.msra.mxu0 0.0
    %446 = vmatprep.subr.mxu0 0.0
    %447 = vmatpush1.msra.mxu0 0.0
    %448 = vmatprep.subr.mxu0 0.0
    %449 = vmatpush1.msra.mxu0 0.0
    %450 = vmatprep.subr.mxu0 0.0
    %451 = vmatpush1.msra.mxu0 0.0
    %452 = vmatprep.subr.mxu0 0.0
    %453 = vmatpush1.msra.mxu0 0.0
    %454 = vmatprep.mubr.f32.mxu0 0.0
    %455 = vmatmul.mubr.f32.gmra.mrb[0].mxu0 %v388
    %v456 = vpop.f32.mrb[0].mxu0
    %v457 = vadd.f32 0.0, %v456
    %v458 = vpop.f32.mrb[0].mxu0
    %459 = vdwg.mxu0
    %v460 = vadd.f32 %v387, %v457
    %v461 = vxor.u32 %v460, 2147483648
    %v462 = vmul.f32 %v461, 1.442695
    %v463 = vpow.pop %v462
    %v464 = vadd.f32 %v463, 1.0
    %v465 = vrcp.pop %v464
    %v466 = vmul.f32 1.0, %v465
    %v467 = vtanh.pop %v460
    %v468 = vmul.f32 %v466, %v375
    %470 = vrot.lane.b32.xlu0 %v467, 32
    %v471 = vpop.permute.xlu0 %470
    %v473 = vmul.f32 %v466, %v471
    %475 = vrot.lane.b32.xlu0 %v473, 32
    %v476 = vpop.permute.xlu0 %475
    %v478 = vadd.f32 %v468, %v476
    %v479 = vtanh.pop %v478
    %481 = vrot.lane.b32.xlu0 %v479, 32
    %v482 = vpop.permute.xlu0 %481
    %v484 = vmul.f32 %v466, %v482
    %486 = vrot.lane.b32.xlu0 %v484, 64
    %v487 = vpop.permute.xlu0 %486
    %489 = vst.msk [vmem:[#allocation2 + $0x18] sm:$0xff] %vm73, %v487
    %v490 = vld [vmem:[#allocation3 + $0x20] sm:$0xff]
    %v491 = vsel %vm73, %v487, 0
    %493 = vmatprep.subr.mxu0 0.0
    %494 = vmatpush1.msra.mxu0 %v62
    %495 = vmatprep.subr.mxu0 0.0
    %496 = vmatpush1.msra.mxu0 %v63
    %497 = vmatprep.subr.mxu0 0.0
    %498 = vmatpush1.msra.mxu0 %v64
    %499 = vmatprep.subr.mxu0 0.0
    %500 = vmatpush1.msra.mxu0 %v65
    %501 = vmatprep.subr.mxu0 0.0
    %502 = vmatpush1.msra.mxu0 0.0
    %503 = vmatprep.subr.mxu0 0.0
    %504 = vmatpush1.msra.mxu0 0.0
    %505 = vmatprep.subr.mxu0 0.0
    %506 = vmatpush1.msra.mxu0 0.0
    %507 = vmatprep.subr.mxu0 0.0
    %508 = vmatpush1.msra.mxu0 0.0
    %509 = vmatprep.subr.mxu0 0.0
    %510 = vmatpush1.msra.mxu0 0.0
    %511 = vmatprep.subr.mxu0 0.0
    %512 = vmatpush1.msra.mxu0 0.0
    %513 = vmatprep.subr.mxu0 0.0
    %514 = vmatpush1.msra.mxu0 0.0
    %515 = vmatprep.subr.mxu0 0.0
    %516 = vmatpush1.msra.mxu0 0.0
    %517 = vmatprep.subr.mxu0 0.0
    %518 = vmatpush1.msra.mxu0 0.0
    %519 = vmatprep.subr.mxu0 0.0
    %520 = vmatpush1.msra.mxu0 0.0
    %521 = vmatprep.subr.mxu0 0.0
    %522 = vmatpush1.msra.mxu0 0.0
    %523 = vmatprep.subr.mxu0 0.0
    %524 = vmatpush1.msra.mxu0 0.0
    %525 = vmatprep.subr.mxu0 0.0
    %526 = vmatpush1.msra.mxu0 0.0
    %527 = vmatprep.subr.mxu0 0.0
    %528 = vmatpush1.msra.mxu0 0.0
    %529 = vmatprep.subr.mxu0 0.0
    %530 = vmatpush1.msra.mxu0 0.0
    %531 = vmatprep.subr.mxu0 0.0
    %532 = vmatpush1.msra.mxu0 0.0
    %533 = vmatprep.subr.mxu0 0.0
    %534 = vmatpush1.msra.mxu0 0.0
    %535 = vmatprep.subr.mxu0 0.0
    %536 = vmatpush1.msra.mxu0 0.0
    %537 = vmatprep.subr.mxu0 0.0
    %538 = vmatpush1.msra.mxu0 0.0
    %539 = vmatprep.subr.mxu0 0.0
    %540 = vmatpush1.msra.mxu0 0.0
    %541 = vmatprep.subr.mxu0 0.0
    %542 = vmatpush1.msra.mxu0 0.0
    %543 = vmatprep.subr.mxu0 0.0
    %544 = vmatpush1.msra.mxu0 0.0
    %545 = vmatprep.subr.mxu0 0.0
    %546 = vmatpush1.msra.mxu0 0.0
    %547 = vmatprep.subr.mxu0 0.0
    %548 = vmatpush1.msra.mxu0 0.0
    %549 = vmatprep.subr.mxu0 0.0
    %550 = vmatpush1.msra.mxu0 0.0
    %551 = vmatprep.subr.mxu0 0.0
    %552 = vmatpush1.msra.mxu0 0.0
    %553 = vmatprep.subr.mxu0 0.0
    %554 = vmatpush1.msra.mxu0 0.0
    %555 = vmatprep.subr.mxu0 0.0
    %556 = vmatpush1.msra.mxu0 0.0
    %557 = vmatprep.mubr.f32.mxu0 0.0
    %558 = vmatmul.mubr.f32.gmra.mrb[0].mxu0 %v491
    %v559 = vpop.f32.mrb[0].mxu0
    %v560 = vadd.f32 0.0, %v559
    %v561 = vpop.f32.mrb[0].mxu0
    %562 = vdwg.mxu0
    %v563 = vadd.f32 %v490, %v560
    %v564 = vxor.u32 %v563, 2147483648
    %v565 = vmul.f32 %v564, 1.442695
    %v566 = vpow.pop %v565
    %v567 = vadd.f32 %v566, 1.0
    %v568 = vrcp.pop %v567
    %v569 = vmul.f32 1.0, %v568
    %v570 = vtanh.pop %v563
    %v571 = vmul.f32 %v569, %v478
    %573 = vrot.lane.b32.xlu0 %v570, 32
    %v574 = vpop.permute.xlu0 %573
    %v576 = vmul.f32 %v569, %v574
    %578 = vrot.lane.b32.xlu0 %v576, 32
    %v579 = vpop.permute.xlu0 %578
    %v581 = vadd.f32 %v571, %v579
    %v582 = vtanh.pop %v581
    %584 = vrot.lane.b32.xlu0 %v582, 32
    %v585 = vpop.permute.xlu0 %584
    %v587 = vmul.f32 %v569, %v585
    %589 = vrot.lane.b32.xlu0 %v587, 64
    %v590 = vpop.permute.xlu0 %589
    %592 = vst.msk [vmem:[#allocation2 + $0x20] sm:$0xff] %vm73, %v590
    %v593 = vld [vmem:[#allocation3 + $0x28] sm:$0xff]
    %v594 = vsel %vm73, %v590, 0
    %596 = vmatprep.subr.mxu0 0.0
    %597 = vmatpush1.msra.mxu0 %v62
    %598 = vmatprep.subr.mxu0 0.0
    %599 = vmatpush1.msra.mxu0 %v63
    %600 = vmatprep.subr.mxu0 0.0
    %601 = vmatpush1.msra.mxu0 %v64
    %602 = vmatprep.subr.mxu0 0.0
    %603 = vmatpush1.msra.mxu0 %v65
    %604 = vmatprep.subr.mxu0 0.0
    %605 = vmatpush1.msra.mxu0 0.0
    %606 = vmatprep.subr.mxu0 0.0
    %607 = vmatpush1.msra.mxu0 0.0
    %608 = vmatprep.subr.mxu0 0.0
    %609 = vmatpush1.msra.mxu0 0.0
    %610 = vmatprep.subr.mxu0 0.0
    %611 = vmatpush1.msra.mxu0 0.0
    %612 = vmatprep.subr.mxu0 0.0
    %613 = vmatpush1.msra.mxu0 0.0
    %614 = vmatprep.subr.mxu0 0.0
    %615 = vmatpush1.msra.mxu0 0.0
    %616 = vmatprep.subr.mxu0 0.0
    %617 = vmatpush1.msra.mxu0 0.0
    %618 = vmatprep.subr.mxu0 0.0
    %619 = vmatpush1.msra.mxu0 0.0
    %620 = vmatprep.subr.mxu0 0.0
    %621 = vmatpush1.msra.mxu0 0.0
    %622 = vmatprep.subr.mxu0 0.0
    %623 = vmatpush1.msra.mxu0 0.0
    %624 = vmatprep.subr.mxu0 0.0
    %625 = vmatpush1.msra.mxu0 0.0
    %626 = vmatprep.subr.mxu0 0.0
    %627 = vmatpush1.msra.mxu0 0.0
    %628 = vmatprep.subr.mxu0 0.0
    %629 = vmatpush1.msra.mxu0 0.0
    %630 = vmatprep.subr.mxu0 0.0
    %631 = vmatpush1.msra.mxu0 0.0
    %632 = vmatprep.subr.mxu0 0.0
    %633 = vmatpush1.msra.mxu0 0.0
    %634 = vmatprep.subr.mxu0 0.0
    %635 = vmatpush1.msra.mxu0 0.0
    %636 = vmatprep.subr.mxu0 0.0
    %637 = vmatpush1.msra.mxu0 0.0
    %638 = vmatprep.subr.mxu0 0.0
    %639 = vmatpush1.msra.mxu0 0.0
    %640 = vmatprep.subr.mxu0 0.0
    %641 = vmatpush1.msra.mxu0 0.0
    %642 = vmatprep.subr.mxu0 0.0
    %643 = vmatpush1.msra.mxu0 0.0
    %644 = vmatprep.subr.mxu0 0.0
    %645 = vmatpush1.msra.mxu0 0.0
    %646 = vmatprep.subr.mxu0 0.0
    %647 = vmatpush1.msra.mxu0 0.0
    %648 = vmatprep.subr.mxu0 0.0
    %649 = vmatpush1.msra.mxu0 0.0
    %650 = vmatprep.subr.mxu0 0.0
    %651 = vmatpush1.msra.mxu0 0.0
    %652 = vmatprep.subr.mxu0 0.0
    %653 = vmatpush1.msra.mxu0 0.0
    %654 = vmatprep.subr.mxu0 0.0
    %655 = vmatpush1.msra.mxu0 0.0
    %656 = vmatprep.subr.mxu0 0.0
    %657 = vmatpush1.msra.mxu0 0.0
    %658 = vmatprep.subr.mxu0 0.0
    %659 = vmatpush1.msra.mxu0 0.0
    %660 = vmatprep.mubr.f32.mxu0 0.0
    %661 = vmatmul.mubr.f32.gmra.mrb[0].mxu0 %v594
    %v662 = vpop.f32.mrb[0].mxu0
    %v663 = vadd.f32 0.0, %v662
    %v664 = vpop.f32.mrb[0].mxu0
    %665 = vdwg.mxu0
    %v666 = vadd.f32 %v593, %v663
    %v667 = vxor.u32 %v666, 2147483648
    %v668 = vmul.f32 %v667, 1.442695
    %v669 = vpow.pop %v668
    %v670 = vadd.f32 %v669, 1.0
    %v671 = vrcp.pop %v670
    %v672 = vmul.f32 1.0, %v671
    %v673 = vtanh.pop %v666
    %v674 = vmul.f32 %v672, %v581
    %676 = vrot.lane.b32.xlu0 %v673, 32
    %v677 = vpop.permute.xlu0 %676
    %v679 = vmul.f32 %v672, %v677
    %681 = vrot.lane.b32.xlu0 %v679, 32
    %v682 = vpop.permute.xlu0 %681
    %v684 = vadd.f32 %v674, %v682
    %v685 = vtanh.pop %v684
    %687 = vrot.lane.b32.xlu0 %v685, 32
    %v688 = vpop.permute.xlu0 %687
    %v690 = vmul.f32 %v672, %v688
    %692 = vrot.lane.b32.xlu0 %v690, 64
    %v693 = vpop.permute.xlu0 %692
    %695 = vst.msk [vmem:[#allocation2 + $0x28] sm:$0xff] %vm73, %v693
    %v696 = vld [vmem:[#allocation3 + $0x30] sm:$0xff]
    %v697 = vsel %vm73, %v693, 0
    %699 = vmatprep.subr.mxu0 0.0
    %700 = vmatpush1.msra.mxu0 %v62
    %701 = vmatprep.subr.mxu0 0.0
    %702 = vmatpush1.msra.mxu0 %v63
    %703 = vmatprep.subr.mxu0 0.0
    %704 = vmatpush1.msra.mxu0 %v64
    %705 = vmatprep.subr.mxu0 0.0
    %706 = vmatpush1.msra.mxu0 %v65
    %707 = vmatprep.subr.mxu0 0.0
    %708 = vmatpush1.msra.mxu0 0.0
    %709 = vmatprep.subr.mxu0 0.0
    %710 = vmatpush1.msra.mxu0 0.0
    %711 = vmatprep.subr.mxu0 0.0
    %712 = vmatpush1.msra.mxu0 0.0
    %713 = vmatprep.subr.mxu0 0.0
    %714 = vmatpush1.msra.mxu0 0.0
    %715 = vmatprep.subr.mxu0 0.0
    %716 = vmatpush1.msra.mxu0 0.0
    %717 = vmatprep.subr.mxu0 0.0
    %718 = vmatpush1.msra.mxu0 0.0
    %719 = vmatprep.subr.mxu0 0.0
    %720 = vmatpush1.msra.mxu0 0.0
    %721 = vmatprep.subr.mxu0 0.0
    %722 = vmatpush1.msra.mxu0 0.0
    %723 = vmatprep.subr.mxu0 0.0
    %724 = vmatpush1.msra.mxu0 0.0
    %725 = vmatprep.subr.mxu0 0.0
    %726 = vmatpush1.msra.mxu0 0.0
    %727 = vmatprep.subr.mxu0 0.0
    %728 = vmatpush1.msra.mxu0 0.0
    %729 = vmatprep.subr.mxu0 0.0
    %730 = vmatpush1.msra.mxu0 0.0
    %731 = vmatprep.subr.mxu0 0.0
    %732 = vmatpush1.msra.mxu0 0.0
    %733 = vmatprep.subr.mxu0 0.0
    %734 = vmatpush1.msra.mxu0 0.0
    %735 = vmatprep.subr.mxu0 0.0
    %736 = vmatpush1.msra.mxu0 0.0
    %737 = vmatprep.subr.mxu0 0.0
    %738 = vmatpush1.msra.mxu0 0.0
    %739 = vmatprep.subr.mxu0 0.0
    %740 = vmatpush1.msra.mxu0 0.0
    %741 = vmatprep.subr.mxu0 0.0
    %742 = vmatpush1.msra.mxu0 0.0
    %743 = vmatprep.subr.mxu0 0.0
    %744 = vmatpush1.msra.mxu0 0.0
    %745 = vmatprep.subr.mxu0 0.0
    %746 = vmatpush1.msra.mxu0 0.0
    %747 = vmatprep.subr.mxu0 0.0
    %748 = vmatpush1.msra.mxu0 0.0
    %749 = vmatprep.subr.mxu0 0.0
    %750 = vmatpush1.msra.mxu0 0.0
    %751 = vmatprep.subr.mxu0 0.0
    %752 = vmatpush1.msra.mxu0 0.0
    %753 = vmatprep.subr.mxu0 0.0
    %754 = vmatpush1.msra.mxu0 0.0
    %755 = vmatprep.subr.mxu0 0.0
    %756 = vmatpush1.msra.mxu0 0.0
    %757 = vmatprep.subr.mxu0 0.0
    %758 = vmatpush1.msra.mxu0 0.0
    %759 = vmatprep.subr.mxu0 0.0
    %760 = vmatpush1.msra.mxu0 0.0
    %761 = vmatprep.subr.mxu0 0.0
    %762 = vmatpush1.msra.mxu0 0.0
    %763 = vmatprep.mubr.f32.mxu0 0.0
    %764 = vmatmul.mubr.f32.gmra.mrb[0].mxu0 %v697
    %v765 = vpop.f32.mrb[0].mxu0
    %v766 = vadd.f32 0.0, %v765
    %v767 = vpop.f32.mrb[0].mxu0
    %768 = vdwg.mxu0
    %v769 = vadd.f32 %v696, %v766
    %v770 = vxor.u32 %v769, 2147483648
    %v771 = vmul.f32 %v770, 1.442695
    %v772 = vpow.pop %v771
    %v773 = vadd.f32 %v772, 1.0
    %v774 = vrcp.pop %v773
    %v775 = vmul.f32 1.0, %v774
    %v776 = vtanh.pop %v769
    %v777 = vmul.f32 %v775, %v684
    %779 = vrot.lane.b32.xlu0 %v776, 32
    %v780 = vpop.permute.xlu0 %779
    %v782 = vmul.f32 %v775, %v780
    %784 = vrot.lane.b32.xlu0 %v782, 32
    %v785 = vpop.permute.xlu0 %784
    %v787 = vadd.f32 %v777, %v785
    %v788 = vtanh.pop %v787
    %790 = vrot.lane.b32.xlu0 %v788, 32
    %v791 = vpop.permute.xlu0 %790
    %v793 = vmul.f32 %v775, %v791
    %795 = vrot.lane.b32.xlu0 %v793, 64
    %v796 = vpop.permute.xlu0 %795
    %798 = vst.msk [vmem:[#allocation2 + $0x30] sm:$0xff] %vm73, %v796
    %v799 = vld [vmem:[#allocation3 + $0x38] sm:$0xff]
    %v800 = vsel %vm73, %v796, 0
    %802 = vmatprep.subr.mxu0 0.0
    %803 = vmatpush1.msra.mxu0 %v62
    %804 = vmatprep.subr.mxu0 0.0
    %805 = vmatpush1.msra.mxu0 %v63
    %806 = vmatprep.subr.mxu0 0.0
    %807 = vmatpush1.msra.mxu0 %v64
    %808 = vmatprep.subr.mxu0 0.0
    %809 = vmatpush1.msra.mxu0 %v65
    %810 = vmatprep.subr.mxu0 0.0
    %811 = vmatpush1.msra.mxu0 0.0
    %812 = vmatprep.subr.mxu0 0.0
    %813 = vmatpush1.msra.mxu0 0.0
    %814 = vmatprep.subr.mxu0 0.0
    %815 = vmatpush1.msra.mxu0 0.0
    %816 = vmatprep.subr.mxu0 0.0
    %817 = vmatpush1.msra.mxu0 0.0
    %818 = vmatprep.subr.mxu0 0.0
    %819 = vmatpush1.msra.mxu0 0.0
    %820 = vmatprep.subr.mxu0 0.0
    %821 = vmatpush1.msra.mxu0 0.0
    %822 = vmatprep.subr.mxu0 0.0
    %823 = vmatpush1.msra.mxu0 0.0
    %824 = vmatprep.subr.mxu0 0.0
    %825 = vmatpush1.msra.mxu0 0.0
    %826 = vmatprep.subr.mxu0 0.0
    %827 = vmatpush1.msra.mxu0 0.0
    %828 = vmatprep.subr.mxu0 0.0
    %829 = vmatpush1.msra.mxu0 0.0
    %830 = vmatprep.subr.mxu0 0.0
    %831 = vmatpush1.msra.mxu0 0.0
    %832 = vmatprep.subr.mxu0 0.0
    %833 = vmatpush1.msra.mxu0 0.0
    %834 = vmatprep.subr.mxu0 0.0
    %835 = vmatpush1.msra.mxu0 0.0
    %836 = vmatprep.subr.mxu0 0.0
    %837 = vmatpush1.msra.mxu0 0.0
    %838 = vmatprep.subr.mxu0 0.0
    %839 = vmatpush1.msra.mxu0 0.0
    %840 = vmatprep.subr.mxu0 0.0
    %841 = vmatpush1.msra.mxu0 0.0
    %842 = vmatprep.subr.mxu0 0.0
    %843 = vmatpush1.msra.mxu0 0.0
    %844 = vmatprep.subr.mxu0 0.0
    %845 = vmatpush1.msra.mxu0 0.0
    %846 = vmatprep.subr.mxu0 0.0
    %847 = vmatpush1.msra.mxu0 0.0
    %848 = vmatprep.subr.mxu0 0.0
    %849 = vmatpush1.msra.mxu0 0.0
    %850 = vmatprep.subr.mxu0 0.0
    %851 = vmatpush1.msra.mxu0 0.0
    %852 = vmatprep.subr.mxu0 0.0
    %853 = vmatpush1.msra.mxu0 0.0
    %854 = vmatprep.subr.mxu0 0.0
    %855 = vmatpush1.msra.mxu0 0.0
    %856 = vmatprep.subr.mxu0 0.0
    %857 = vmatpush1.msra.mxu0 0.0
    %858 = vmatprep.subr.mxu0 0.0
    %859 = vmatpush1.msra.mxu0 0.0
    %860 = vmatprep.subr.mxu0 0.0
    %861 = vmatpush1.msra.mxu0 0.0
    %862 = vmatprep.subr.mxu0 0.0
    %863 = vmatpush1.msra.mxu0 0.0
    %864 = vmatprep.subr.mxu0 0.0
    %865 = vmatpush1.msra.mxu0 0.0
    %866 = vmatprep.mubr.f32.mxu0 0.0
    %867 = vmatmul.mubr.f32.gmra.mrb[0].mxu0 %v800
    %v868 = vpop.f32.mrb[0].mxu0
    %v869 = vadd.f32 0.0, %v868
    %v870 = vpop.f32.mrb[0].mxu0
    %871 = vdwg.mxu0
    %v872 = vadd.f32 %v799, %v869
    %v873 = vxor.u32 %v872, 2147483648
    %v874 = vmul.f32 %v873, 1.442695
    %v875 = vpow.pop %v874
    %v876 = vadd.f32 %v875, 1.0
    %v877 = vrcp.pop %v876
    %v878 = vmul.f32 1.0, %v877
    %v879 = vtanh.pop %v872
    %v880 = vmul.f32 %v878, %v787
    %882 = vrot.lane.b32.xlu0 %v879, 32
    %v883 = vpop.permute.xlu0 %882
    %v885 = vmul.f32 %v878, %v883
    %887 = vrot.lane.b32.xlu0 %v885, 32
    %v888 = vpop.permute.xlu0 %887
    %v890 = vadd.f32 %v880, %v888
    %v891 = vtanh.pop %v890
    %893 = vrot.lane.b32.xlu0 %v891, 32
    %v894 = vpop.permute.xlu0 %893
    %v896 = vmul.f32 %v878, %v894
    %898 = vrot.lane.b32.xlu0 %v896, 64
    %v899 = vpop.permute.xlu0 %898
    %901 = vst.msk [vmem:[#allocation2 + $0x38] sm:$0xff] %vm73, %v899
    %902 = vst.msk [vmem:[#allocation10] sm:$0xff] %vm73, %v899
    %904 = vrot.lane.b32.xlu0 %v890, 96
    %v905 = vpop.permute.xlu0 %904
    %907 = vst.msk [vmem:[#allocation10 + $0x8] sm:$0xff] %vm73, %v905
    %v908 = vld [vmem:[#allocation2] sm:$0xff]
    %v909 = vld [vmem:[#allocation2 + $0x8] sm:$0xff]
    %v910 = vld [vmem:[#allocation2 + $0x10] sm:$0xff]
    %v911 = vld [vmem:[#allocation2 + $0x18] sm:$0xff]
    %v912 = vld [vmem:[#allocation2 + $0x20] sm:$0xff]
    %v913 = vld [vmem:[#allocation2 + $0x28] sm:$0xff]
    %v914 = vld [vmem:[#allocation2 + $0x30] sm:$0xff]
    %v915 = vld [vmem:[#allocation2 + $0x38] sm:$0xff]
    %v916 = vld [vmem:[%s3] sm:$0x1]
    %v918 = vlaneseq
    %v919 = vshrl.u32 %v918, 7
    %v920 = vsub.s32 0, %v919
    %v921 = vrot.slane %v916, %v920
    %v924 = vsel %vm73, %v908, 0
    %v927 = vsel %vm73, %v909, 0
    %v930 = vsel %vm73, %v910, 0
    %v933 = vsel %vm73, %v911, 0
    %v936 = vsel %vm73, %v912, 0
    %v939 = vsel %vm73, %v913, 0
    %v942 = vsel %vm73, %v914, 0
    %v945 = vsel %vm73, %v915, 0
    %947 = vmatprep.subr.mxu0 0.0
    %948 = vmatpush1.msra.mxu0 %v66
    %949 = vmatprep.subr.mxu0 0.0
    %950 = vmatpush1.msra.mxu0 %v67
    %951 = vmatprep.subr.mxu0 0.0
    %952 = vmatpush1.msra.mxu0 %v68
    %953 = vmatprep.subr.mxu0 0.0
    %954 = vmatpush1.msra.mxu0 %v69
    %955 = vmatprep.subr.mxu0 0.0
    %956 = vmatpush1.msra.mxu0 0.0
    %957 = vmatprep.subr.mxu0 0.0
    %958 = vmatpush1.msra.mxu0 0.0
    %959 = vmatprep.subr.mxu0 0.0
    %960 = vmatpush1.msra.mxu0 0.0
    %961 = vmatprep.subr.mxu0 0.0
    %962 = vmatpush1.msra.mxu0 0.0
    %963 = vmatprep.subr.mxu0 0.0
    %964 = vmatpush1.msra.mxu0 0.0
    %965 = vmatprep.subr.mxu0 0.0
    %966 = vmatpush1.msra.mxu0 0.0
    %967 = vmatprep.subr.mxu0 0.0
    %968 = vmatpush1.msra.mxu0 0.0
    %969 = vmatprep.subr.mxu0 0.0
    %970 = vmatpush1.msra.mxu0 0.0
    %971 = vmatprep.subr.mxu0 0.0
    %972 = vmatpush1.msra.mxu0 0.0
    %973 = vmatprep.subr.mxu0 0.0
    %974 = vmatpush1.msra.mxu0 0.0
    %975 = vmatprep.subr.mxu0 0.0
    %976 = vmatpush1.msra.mxu0 0.0
    %977 = vmatprep.subr.mxu0 0.0
    %978 = vmatpush1.msra.mxu0 0.0
    %979 = vmatprep.subr.mxu0 0.0
    %980 = vmatpush1.msra.mxu0 0.0
    %981 = vmatprep.subr.mxu0 0.0
    %982 = vmatpush1.msra.mxu0 0.0
    %983 = vmatprep.subr.mxu0 0.0
    %984 = vmatpush1.msra.mxu0 0.0
    %985 = vmatprep.subr.mxu0 0.0
    %986 = vmatpush1.msra.mxu0 0.0
    %987 = vmatprep.subr.mxu0 0.0
    %988 = vmatpush1.msra.mxu0 0.0
    %989 = vmatprep.subr.mxu0 0.0
    %990 = vmatpush1.msra.mxu0 0.0
    %991 = vmatprep.subr.mxu0 0.0
    %992 = vmatpush1.msra.mxu0 0.0
    %993 = vmatprep.subr.mxu0 0.0
    %994 = vmatpush1.msra.mxu0 0.0
    %995 = vmatprep.subr.mxu0 0.0
    %996 = vmatpush1.msra.mxu0 0.0
    %997 = vmatprep.subr.mxu0 0.0
    %998 = vmatpush1.msra.mxu0 0.0
    %999 = vmatprep.subr.mxu0 0.0
    %1000 = vmatpush1.msra.mxu0 0.0
    %1001 = vmatprep.subr.mxu0 0.0
    %1002 = vmatpush1.msra.mxu0 0.0
    %1003 = vmatprep.subr.mxu0 0.0
    %1004 = vmatpush1.msra.mxu0 0.0
    %1005 = vmatprep.subr.mxu0 0.0
    %1006 = vmatpush1.msra.mxu0 0.0
    %1007 = vmatprep.subr.mxu0 0.0
    %1008 = vmatpush1.msra.mxu0 0.0
    %1009 = vmatprep.subr.mxu0 0.0
    %1010 = vmatpush1.msra.mxu0 0.0
    %1011 = vmatprep.mubr.f32.mxu0 0.0
    %1012 = vmatmul.mubr.f32.gmra.mrb[0].mxu0 %v924
    %v1013 = vpop.f32.mrb[0].mxu0
    %v1014 = vadd.f32 %v921, %v1013
    %v1015 = vpop.f32.mrb[0].mxu0
    %1016 = vmatprep.mubr.f32.mxu0 0.0
    %1017 = vmatmul.mubr.f32.gmra.mrb[0].mxu0 %v927
    %v1018 = vpop.f32.mrb[0].mxu0
    %v1019 = vadd.f32 %v921, %v1018
    %v1020 = vpop.f32.mrb[0].mxu0
    %1021 = vmatprep.mubr.f32.mxu0 0.0
    %1022 = vmatmul.mubr.f32.gmra.mrb[0].mxu0 %v930
    %v1023 = vpop.f32.mrb[0].mxu0
    %v1024 = vadd.f32 %v921, %v1023
    %v1025 = vpop.f32.mrb[0].mxu0
    %1026 = vmatprep.mubr.f32.mxu0 0.0
    %1027 = vmatmul.mubr.f32.gmra.mrb[0].mxu0 %v933
    %v1028 = vpop.f32.mrb[0].mxu0
    %v1029 = vadd.f32 %v921, %v1028
    %v1030 = vpop.f32.mrb[0].mxu0
    %1031 = vmatprep.mubr.f32.mxu0 0.0
    %1032 = vmatmul.mubr.f32.gmra.mrb[0].mxu0 %v936
    %v1033 = vpop.f32.mrb[0].mxu0
    %v1034 = vadd.f32 %v921, %v1033
    %v1035 = vpop.f32.mrb[0].mxu0
    %1036 = vmatprep.mubr.f32.mxu0 0.0
    %1037 = vmatmul.mubr.f32.gmra.mrb[0].mxu0 %v939
    %v1038 = vpop.f32.mrb[0].mxu0
    %v1039 = vadd.f32 %v921, %v1038
    %v1040 = vpop.f32.mrb[0].mxu0
    %1041 = vmatprep.mubr.f32.mxu0 0.0
    %1042 = vmatmul.mubr.f32.gmra.mrb[0].mxu0 %v942
    %v1043 = vpop.f32.mrb[0].mxu0
    %v1044 = vadd.f32 %v921, %v1043
    %v1045 = vpop.f32.mrb[0].mxu0
    %1046 = vmatprep.mubr.f32.mxu0 0.0
    %1047 = vmatmul.mubr.f32.gmra.mrb[0].mxu0 %v945
    %v1048 = vpop.f32.mrb[0].mxu0
    %v1049 = vadd.f32 %v921, %v1048
    %v1050 = vpop.f32.mrb[0].mxu0
    %1051 = vdwg.mxu0
    %1052 = vst [vmem:[#allocation9] sm:$0xff] %v1014
    %1053 = vst [vmem:[#allocation9 + $0x8] sm:$0xff] %v1019
    %1054 = vst [vmem:[#allocation9 + $0x10] sm:$0xff] %v1024
    %1055 = vst [vmem:[#allocation9 + $0x18] sm:$0xff] %v1029
    %1056 = vst [vmem:[#allocation9 + $0x20] sm:$0xff] %v1034
    %1057 = vst [vmem:[#allocation9 + $0x28] sm:$0xff] %v1039
    %1058 = vst [vmem:[#allocation9 + $0x30] sm:$0xff] %v1044
    %1059 = vst [vmem:[#allocation9 + $0x38] sm:$0xff] %v1049
    // Predicated region
    $region30: #{tpu_custom_call.1} parent=1 // pred_check
      _
    $region31: #{tpu_custom_call.1} parent=1 // pred_check_branch
      %1061 = sbr.rel (0) target = $region33
    $region32: #{tpu_custom_call.1} parent=1 // pred_region
      %s1063 = ssub.s32 1024, 1024
      %1064 = vsyncadd [#allocation5], %s1063
      %s1065 = sshll.u32 [#allocation9], 4
      %s1066 = int_to_ptr.vmem [resolvable:$true] %s1065
      %1071 = dma.vmem_to_hbm [thread:$0]  %s1066, 1024, %s4, [#allocation5], 128, 128, 8
    $region33: #{tpu_custom_call.1} parent=1 // pred_fallthru
      _
    // Predicated region
    $region34: #{tpu_custom_call.1} parent=1 // pred_check
      _
    $region35: #{tpu_custom_call.1} parent=1 // pred_check_branch
      %1073 = sbr.rel (0) target = $region37
    $region36: #{tpu_custom_call.1} parent=1 // pred_region
      %s1075 = ssub.s32 256, 256
      %1076 = vsyncadd [#allocation11], %s1075
      %s1077 = sshll.u32 [#allocation10], 4
      %s1078 = int_to_ptr.vmem [resolvable:$true] %s1077
      %1083 = dma.vmem_to_hbm [thread:$0]  %s1078, 256, %s5, [#allocation11], 128, 128, 8
    $region37: #{tpu_custom_call.1} parent=1 // pred_fallthru
      _
    // Predicated region
    $region38: #{tpu_custom_call.1} parent=1 // pred_check
      _
    $region39: #{tpu_custom_call.1} parent=1 // pred_check_branch
      %1085 = sbr.rel (0) target = $region41
    $region40: #{tpu_custom_call.1} parent=1 // pred_region
      %1086 = dma.done [#allocation5], 1024
    $region41: #{tpu_custom_call.1} parent=1 // pred_fallthru
      _
    // Predicated region
    $region42: #{tpu_custom_call.1} parent=1 // pred_check
      _
    $region43: #{tpu_custom_call.1} parent=1 // pred_check_branch
      %1088 = sbr.rel (0) target = $region45
    $region44: #{tpu_custom_call.1} parent=1 // pred_region
      %1089 = dma.done [#allocation11], 256
    $region45: #{tpu_custom_call.1} parent=1 // pred_fallthru
      _
    %1090 = vsyncpa [#allocation4], 1
    %1091 = vsyncpa [#allocation7], 1
    %1092 = vsyncpa [#allocation5], 1
    %1093 = vsyncpa [#allocation11], 1

</llo_original>
